<compile_context>
chip_gen: v5e
topology: v5e:2x2
jax: 0.10.0
libtpu: 0.0.40
codegen_flags: <defaults>
</compile_context>

<pallas_src>
import functools

import jax
import jax.numpy as jnp
from jax.experimental import pallas as pl
from jax.experimental.pallas import tpu as pltpu


def _rmsnorm_kernel(x_ref, w_ref, o_ref, *, eps: float):
    # x_ref: (tm, D) tile, w_ref: (1, D), o_ref: (tm, D)
    xf = x_ref[...].astype(jnp.float32)                              # x.to(float32)
    inv = jax.lax.rsqrt(jnp.mean(xf * xf, axis=-1, keepdims=True) + eps)
    o_ref[...] = (xf * inv * w_ref[...].astype(jnp.float32)).astype(o_ref.dtype)


def _vmem_capacity_bytes() -> int:
    """Physical VMEM per TensorCore; conservative 64 MiB fallback (v7x)."""
    try:
        info = pltpu.get_tpu_info()
        cap = int(getattr(info, "vmem_capacity_bytes", 0))
        if cap > 0:
            return cap
    except Exception:
        pass
    return 64 << 20


def _num_tensorcores() -> int:
    """Best-effort TC-per-device count (v7x / megacore v4/v5p => 2)."""
    try:
        kind = jax.devices()[0].device_kind.lower().replace(" ", "")
    except Exception:
        return 1
    if "lite" in kind or "v5e" in kind or "v6e" in kind:
        return 1
    for tag in ("v4", "v5p", "v6p", "v7", "7x"):
        if tag in kind:
            return 2
    return 1


def _sublane_pack(itemsize: int) -> int:
    # Rows per packed sublane group: f32 -> 8, bf16/f16 -> 16, int8/fp8 -> 32.
    if itemsize >= 4:
        return 8
    if itemsize == 2:
        return 16
    return 32


def rmsnorm(x: jax.Array, weight: jax.Array, eps: float = 1e-6) -> jax.Array:
    """RMSNorm over the last axis of x. weight has shape (dim,)."""
    orig_shape = x.shape
    orig_dtype = x.dtype
    dim = orig_shape[-1]
    assert weight.shape == (dim,)

    # Flatten leading dims into rows (no padding, no output slicing).
    x2 = x.reshape(-1, dim)
    rows = x2.shape[0]
    if rows == 0:
        return x

    in_bytes = jnp.dtype(x2.dtype).itemsize
    out_bytes = jnp.dtype(orig_dtype).itemsize
    sub = _sublane_pack(in_bytes)

    # Generation-aware VMEM sizing.
    vmem_cap = _vmem_capacity_bytes()                    # 64 MiB (v7x) / 128 MiB (v5e/v6e)
    vmem_budget = min(vmem_cap // 2, 64 << 20)           # tiles + f32 temps live here
    vmem_limit = min((vmem_cap * 3) // 4, 96 << 20)      # scoped limit, below physical

    # Bytes per row of the tile: double-buffered input + output tiles, plus two
    # f32 copies of the tile (upcast xf + product chain) kept live in-kernel.
    per_row = dim * (2 * in_bytes + 2 * out_bytes + 8)

    tm = min(vmem_budget // per_row, rows)
    tm = (tm // sub) * sub
    if tm < sub:
        # Tiny row count (or absurdly large dim): one full-extent block
        # (block dim == array dim satisfies the tiling constraint).
        tm = rows if rows < sub else sub
    tm = int(max(1, tm))

    # Balance the grid across TensorCores on dual-TC chips (v7x / megacore).
    num_tc = _num_tensorcores()
    grid_n = pl.cdiv(rows, tm)
    if num_tc > 1 and rows > sub and grid_n % num_tc != 0:
        target = ((grid_n + num_tc - 1) // num_tc) * num_tc
        tm_bal = -(-rows // target)                       # ceil(rows / target)
        tm_bal = ((tm_bal + sub - 1) // sub) * sub        # keep sublane-dense
        if sub <= tm_bal <= rows and pl.cdiv(rows, tm_bal) % num_tc == 0:
            tm = int(tm_bal)
            grid_n = pl.cdiv(rows, tm)

    # Keep weight in its native dtype; cast inside the kernel.
    w2 = weight.reshape(1, dim)

    out = pl.pallas_call(
        functools.partial(_rmsnorm_kernel, eps=eps),
        out_shape=jax.ShapeDtypeStruct((rows, dim), orig_dtype),
        grid_spec=pltpu.PrefetchScalarGridSpec(
            num_scalar_prefetch=0,
            grid=(grid_n,),
            in_specs=[
                pl.BlockSpec((tm, dim), lambda i: (i, 0)),   # x tile (tail block masked)
                pl.BlockSpec((1, dim), lambda i: (0, 0)),    # weight (VMEM-resident)
            ],
            out_specs=pl.BlockSpec((tm, dim), lambda i: (i, 0)),
        ),
        compiler_params=pltpu.CompilerParams(
            dimension_semantics=("parallel",),
            vmem_limit_bytes=int(vmem_limit),
        ),
    )(x2, w2)

    return out.reshape(orig_shape)


def _rmsnorm_ref(x, weight, eps=1e-6):
    x_dtype = x.dtype
    xf = x.astype(jnp.float32)
    var = jnp.mean(xf * xf, axis=-1, keepdims=True)
    xf = xf * jax.lax.rsqrt(var + eps)
    return (weight.astype(jnp.float32) * xf).astype(x_dtype)


if __name__ == "__main__":
    key = jax.random.PRNGKey(0)

    # Small shapes consistent with the module's forward (batch=2, seq=8, hidden=32).
    batch, seq, hidden = 2, 8, 32
    x = jax.random.normal(key, (batch, seq, hidden), dtype=jnp.float32).astype(jnp.bfloat16)
    weight = jnp.ones((hidden,), dtype=jnp.float32)   # nn.Parameter(torch.ones(dim))

    y = rmsnorm(x, weight, eps=1e-6)
    jax.block_until_ready(y)
    y_ref = _rmsnorm_ref(x, weight, eps=1e-6)
    assert y.shape == x.shape and y.dtype == x.dtype
    assert jnp.allclose(y.astype(jnp.float32), y_ref.astype(jnp.float32), atol=1e-2, rtol=1e-2)

    # Extra check: lane-dense dim (multiple of 128) with a row count that is NOT
    # a multiple of the tile -> exercises the masked partial tail block path
    # that replaced the old jnp.pad / slice.
    x2 = jax.random.normal(key, (3, 37, 256), dtype=jnp.float32).astype(jnp.bfloat16)
    w2 = 1.0 + 0.01 * jnp.arange(256, dtype=jnp.float32)
    y2 = rmsnorm(x2, w2, eps=1e-6)
    jax.block_until_ready(y2)
    y2_ref = _rmsnorm_ref(x2, w2, eps=1e-6)
    assert y2.shape == x2.shape and y2.dtype == x2.dtype
    assert jnp.allclose(y2.astype(jnp.float32), y2_ref.astype(jnp.float32), atol=1e-2, rtol=1e-2)

    print("KERNEL_OK")
</pallas_src>

<mosaic_0001>
module attributes {stable_mosaic.version = 11 : i64} {
  func.func @_rmsnorm_kernel(%arg0: i32, %arg1: memref<16x32xbf16, #tpu.memory_space<vmem>>, %arg2: memref<1x32xf32, #tpu.memory_space<vmem>>, %arg3: memref<16x32xbf16, #tpu.memory_space<vmem>>) attributes {dimension_semantics = [#tpu.dimension_semantics<parallel>], iteration_bounds = array<i64: 1>, scalar_prefetch = 0 : i64, scratch_operands = 0 : i64, tpu.core_type = #tpu.core_type<tc>, window_params = [{transform_indices = @transform_0, window_bounds = array<i64: 16, 32>}, {pipeline_mode = #tpu.pipeline_mode<synchronous>, transform_indices = @transform_1, window_bounds = array<i64: 1, 32>}, {transform_indices = @transform_2, window_bounds = array<i64: 16, 32>}]} {
    %c0 = arith.constant 0 : index
    %c0_0 = arith.constant 0 : index
    %0 = vector.load %arg1[%c0, %c0_0] : memref<16x32xbf16, #tpu.memory_space<vmem>>, vector<16x32xbf16>
    %1 = arith.extf %0 : vector<16x32xbf16> to vector<16x32xf32>
    %2 = arith.mulf %1, %1 : vector<16x32xf32>
    %cst = arith.constant dense<0.000000e+00> : vector<16xf32>
    %3 = vector.multi_reduction <add>, %2, %cst [1] : vector<16x32xf32> to vector<16xf32>
    %4 = vector.shape_cast %3 : vector<16xf32> to vector<16x1xf32>
    %cst_1 = arith.constant 3.200000e+01 : f32
    %5 = vector.broadcast %cst_1 : f32 to vector<16x1xf32>
    %6 = arith.divf %4, %5 : vector<16x1xf32>
    %cst_2 = arith.constant 9.99999997E-7 : f32
    %7 = vector.broadcast %cst_2 : f32 to vector<16x1xf32>
    %8 = arith.addf %6, %7 : vector<16x1xf32>
    %9 = math.rsqrt %8 : vector<16x1xf32>
    %10 = vector.broadcast %9 : vector<16x1xf32> to vector<16x32xf32>
    %11 = arith.mulf %1, %10 : vector<16x32xf32>
    %c0_3 = arith.constant 0 : index
    %c0_4 = arith.constant 0 : index
    %12 = vector.load %arg2[%c0_3, %c0_4] : memref<1x32xf32, #tpu.memory_space<vmem>>, vector<1x32xf32>
    %13 = vector.broadcast %12 : vector<1x32xf32> to vector<16x32xf32>
    %14 = arith.mulf %11, %13 : vector<16x32xf32>
    %15 = arith.truncf %14 : vector<16x32xf32> to vector<16x32xbf16>
    %c0_5 = arith.constant 0 : index
    %c0_6 = arith.constant 0 : index
    %16 = vector.load %arg3[%c0_5, %c0_6] : memref<16x32xbf16, #tpu.memory_space<vmem>>, vector<16x32xbf16>
    tpu.vector_store %arg3[%c0_5, %c0_6], %15 {strides = array<i32>} : memref<16x32xbf16, #tpu.memory_space<vmem>>, vector<16x32xbf16>,
    return
  }
  func.func @transform_0(%arg0: i32) -> (i32, i32) {
    %c0_i32 = arith.constant 0 : i32
    %c0_i32_0 = arith.constant 0 : i32
    return %arg0, %c0_i32 : i32, i32
  }
  func.func @transform_1(%arg0: i32) -> (i32, i32) {
    %c0_i32 = arith.constant 0 : i32
    %c0_i32_0 = arith.constant 0 : i32
    %c0_i32_1 = arith.constant 0 : i32
    return %c0_i32, %c0_i32_0 : i32, i32
  }
  func.func @transform_2(%arg0: i32) -> (i32, i32) {
    %c0_i32 = arith.constant 0 : i32
    %c0_i32_0 = arith.constant 0 : i32
    return %arg0, %c0_i32 : i32, i32
  }
}

</mosaic_0001>

<llo_original>
// kernel: tpu_custom_call.1
$region0: #{tpu_custom_call.1}
  #allocation0 [shape = 'u32[]', space=smem, size = 0x4, offset = 0x4, fixed_abs, tag = 'smem constant byte address 0x4 - core index']
  #allocation1 [shape = 'u32[72,128]{1,0:T(1,128)}', space=vmem, size = 0x9000, scoped, tag = 'internal scratch']
  %s0 = inlined_call_operand.hbm [shape: bf16[16,32], index: 0, kind: input, shape index: {}]
  %s1 = inlined_call_operand.hbm [shape: f32[1,32], index: 1, kind: input, shape index: {}]
  %s2 = inlined_call_operand.hbm [shape: bf16[16,32], index: 2, kind: output, shape index: {}]
  %s3 = sld [smem:[#allocation0]]
  $region26: #{tpu_custom_call.1} parent=0
    _
  %s5 = ssub.s32 1, %s3
  %s6 = scalar_select 0, %s5, %s3
  $region1: #{tpu_custom_call.1} parent=0
    #allocation2 [shape = 'u8[4096]{0}', space=vmem, size = 0x1000, scoped, tag = 'input window, operand 0, single buffered']
    #allocation3 [shape = 's32[1]{0}', space=sflag, size = 0x4, scoped, tag = 'scoped memory for tpu_custom_call.1']
    #allocation4 [shape = 's32[1]{0}', space=sflag, size = 0x4, scoped, tag = 'scoped memory for tpu_custom_call.1']
    #allocation5 [shape = 'u8[512]{0}', space=vmem, size = 0x400, scoped, tag = 'input window, operand 1, single buffered']
    #allocation6 [shape = 's32[1]{0}', space=sflag, size = 0x4, scoped, tag = 'scoped memory for tpu_custom_call.1']
    #allocation7 [shape = 'u8[4096]{0}', space=vmem, size = 0x1000, scoped, tag = 'output window, operand 0, single buffered']
    %7 = vsyncpa [#allocation3], 0
    %8 = vsyncpa [#allocation6], 0
    %9 = vsyncpa [#allocation4], 0
    // Predicated region
    $region2: #{tpu_custom_call.1} parent=1 // pred_check
      _
    $region3: #{tpu_custom_call.1} parent=1 // pred_check_branch
      %11 = sbr.rel (0) target = $region5
    $region4: #{tpu_custom_call.1} parent=1 // pred_region
      %13 = vsyncadd [#allocation3], 0
      %s14 = sshll.u32 %s0, 4
      %s15 = int_to_ptr.hbm [resolvable:$true] %s14
      %s16 = sshll.u32 [#allocation2], 4
      %s17 = int_to_ptr.vmem [resolvable:$true] %s16
      %22 = dma.hbm_to_vmem [thread:$0]  %s15, 128, %s17, [#allocation3], 64, 64, 4
    $region5: #{tpu_custom_call.1} parent=1 // pred_fallthru
      _
    // Predicated region
    $region6: #{tpu_custom_call.1} parent=1 // pred_check
      _
    $region7: #{tpu_custom_call.1} parent=1 // pred_check_branch
      %24 = sbr.rel (0) target = $region9
    $region8: #{tpu_custom_call.1} parent=1 // pred_region
      %26 = vsyncadd [#allocation6], 0
      %s28 = sshll.u32 %s1, 4
      %s29 = int_to_ptr.hbm [resolvable:$true] %s28
      %s30 = sshll.u32 [#allocation5], 4
      %s31 = int_to_ptr.vmem [resolvable:$true] %s30
      %33 = dma.hbm_to_vmem [thread:$0]  %s29, 16, %s31, [#allocation6]
    $region9: #{tpu_custom_call.1} parent=1 // pred_fallthru
      _
    // Predicated region
    $region10: #{tpu_custom_call.1} parent=1 // pred_check
      _
    $region11: #{tpu_custom_call.1} parent=1 // pred_check_branch
      %35 = sbr.rel (0) target = $region13
    $region12: #{tpu_custom_call.1} parent=1 // pred_region
      %37 = dma.done [#allocation3], 128
    $region13: #{tpu_custom_call.1} parent=1 // pred_fallthru
      _
    // Predicated region
    $region14: #{tpu_custom_call.1} parent=1 // pred_check
      _
    $region15: #{tpu_custom_call.1} parent=1 // pred_check_branch
      %39 = sbr.rel (0) target = $region17
    $region16: #{tpu_custom_call.1} parent=1 // pred_region
      %41 = dma.done [#allocation6], 16
    $region17: #{tpu_custom_call.1} parent=1 // pred_fallthru
      _
    %v42 = vld [vmem:[#allocation2] sm:$0xf]
    %v43 = vld [vmem:[#allocation2 + $0x4] sm:$0xf]
    %v44 = vunpack.c.l.bf16 %v42
    %v45 = vunpack.c.l.bf16 %v43
    %v46 = vmul.f32 %v44, %v44
    %v47 = vmul.f32 %v45, %v45
    %vm48 = vcmask 261120
    %v49 = vsel %vm48, %v46, 0.0
    %50 = vadd.xlane.f32.xlu0 %v49
    %v51 = vpop.xlane.xlu0 %50
    %v52 = vsel %vm48, %v47, 0.0
    %53 = vadd.xlane.f32.xlu0 %v52
    %v54 = vpop.xlane.xlu0 %53
    %v55 = vrcp.pop 32.0
    %v56 = vmul.f32 32.0, %v55
    %v57 = vsub.f32 1.0, %v56
    %v58 = vmul.f32 %v55, %v57
    %v59 = vadd.f32 %v55, %v58
    %vm60 = vweird.f32 %v55
    %v61 = vsel %vm60, %v55, %v59
    %v62 = vmul.f32 %v51, %v61
    %v63 = vmul.f32 %v54, %v61
    %v64 = vadd.f32 %v62, 1e-06
    %v65 = vadd.f32 %v63, 1e-06
    %v66 = vrsqrt.pop %v64
    %v67 = vmul.f32 %v66, %v64
    %v68 = vmul.f32 %v67, %v66
    %v69 = vmul.f32 0.5, %v68
    %v70 = vsub.f32 1.5, %v69
    %v71 = vmul.f32 %v66, %v70
    %vm72 = vweird.f32 %v64
    %vm73 = vweird.f32 %v66
    %vm74 = vmor %vm72, %vm73
    %v75 = vsel %vm74, %v66, %v71
    %v76 = vrsqrt.pop %v65
    %v77 = vmul.f32 %v76, %v65
    %v78 = vmul.f32 %v77, %v76
    %v79 = vmul.f32 0.5, %v78
    %v80 = vsub.f32 1.5, %v79
    %v81 = vmul.f32 %v76, %v80
    %vm82 = vweird.f32 %v65
    %vm83 = vweird.f32 %v76
    %vm84 = vmor %vm82, %vm83
    %v85 = vsel %vm84, %v76, %v81
    %v86 = vmul.f32 %v44, %v75
    %v87 = vmul.f32 %v45, %v85
    %v88 = vld [vmem:[#allocation5] sm:$0x1]
    %v90 = vperm.slane %v88, 0
    %v92 = vmul.f32 %v86, %v90
    %v93 = vmul.f32 %v87, %v90
    %v94 = vpack.c.bf16 %v92, %v92
    %v95 = vpack.c.bf16 %v93, %v93
    %vm96 = vcmask 257024
    %97 = vst.msk [vmem:[#allocation7] sm:$0xf] %vm96, %v94
    %98 = vst.msk [vmem:[#allocation7 + $0x4] sm:$0xf] %vm96, %v95
    // Predicated region
    $region18: #{tpu_custom_call.1} parent=1 // pred_check
      _
    $region19: #{tpu_custom_call.1} parent=1 // pred_check_branch
      %100 = sbr.rel (0) target = $region21
    $region20: #{tpu_custom_call.1} parent=1 // pred_region
      %102 = vsyncadd [#allocation4], 0
      %s103 = sshll.u32 [#allocation7], 4
      %s104 = int_to_ptr.vmem [resolvable:$true] %s103
      %s105 = sshll.u32 %s2, 4
      %s106 = int_to_ptr.hbm [resolvable:$true] %s105
      %111 = dma.vmem_to_hbm [thread:$0]  %s104, 128, %s106, [#allocation4], 64, 64, 4
    $region21: #{tpu_custom_call.1} parent=1 // pred_fallthru
      _
    // Predicated region
    $region22: #{tpu_custom_call.1} parent=1 // pred_check
      _
    $region23: #{tpu_custom_call.1} parent=1 // pred_check_branch
      %113 = sbr.rel (0) target = $region25
    $region24: #{tpu_custom_call.1} parent=1 // pred_region
      %115 = dma.done [#allocation4], 128
    $region25: #{tpu_custom_call.1} parent=1 // pred_fallthru
      _
    %116 = vsyncpa [#allocation3], 1
    %117 = vsyncpa [#allocation6], 1
    %118 = vsyncpa [#allocation4], 1

</llo_original>
